<compile_context>
chip_gen: v7x
topology: tpu7x:2x2x1
jax: 0.10.0
libtpu: 0.0.40
codegen_flags: <defaults>
</compile_context>

<pallas_src>
import functools

import jax
import jax.numpy as jnp
from jax.experimental import pallas as pl
from jax.experimental.pallas import tpu as pltpu

COMMITMENT = 1e-4
NORM_EPS = 1e-12  # F.normalize default eps


def _kmeans_fwd_kernel(x_ref, means_ref, msq_ref, dists_ref, sse_ref, *,
                       num_clusters, seq_len):
    # x_ref:     (B, 1, TL, D)   all batches of one (head, L-tile)
    # means_ref: (1, D, CP)      this head's means, pre-transposed, edge-padded on C
    # msq_ref:   (1, 1, CP)      per-cluster ||m_c||^2 (precomputed in wrapper)
    # dists_ref: (B, 1, TL, C)   true-C dists tile
    # sse_ref:   (1, 1, 1, 1)    per-(head, L-tile) SSE partial
    lt = pl.program_id(1)
    B, _, TL, D = x_ref.shape
    CP = means_ref.shape[2]
    C = num_clusters
    M = B * TL

    x = x_ref[...].reshape(M, D).astype(jnp.float32)                 # (M, D)

    # F.normalize(x, 2, -1): x / clamp_min(||x||, eps) == x * rsqrt(max(||x||^2, eps^2))
    sumsq = jnp.sum(x * x, axis=-1, keepdims=True)                   # (M, 1)
    inv_norm = jax.lax.rsqrt(jnp.maximum(sumsq, jnp.float32(NORM_EPS * NORM_EPS)))
    xn = x * inv_norm                                                # (M, D)
    xn_sq = sumsq * (inv_norm * inv_norm)                            # (M, 1) == ||xn||^2

    # dists = xn @ means^T fed as a plain (M,D)x(D,CP) contraction (RHS was
    # pre-transposed in the wrapper). Operands stay in the input dtype (bf16
    # stays bf16 on v6e/v7x); accumulation is f32.
    dists = jnp.dot(xn.astype(x_ref.dtype), means_ref[0],
                    preferred_element_type=jnp.float32)              # (M, CP)

    # Store only the real clusters (lane-dense automatically when C % 128 == 0).
    d_out = dists if C == CP else dists[:, :C]
    dists_ref[...] = d_out.reshape(B, 1, TL, C).astype(dists_ref.dtype)

    # bucket = argmax over clusters with torch.max first-occurrence tie-break.
    # Padded columns replicate the last real cluster, so no -inf/valid masking
    # is needed (a padded duplicate can never beat its real column under the
    # min-index tie-break).
    # TODO(synk): switch to jnp.argmax once its Mosaic lowering is guaranteed;
    # the max + min-index form below is known to lower and preserves semantics.
    col = jax.lax.broadcasted_iota(jnp.int32, (M, CP), 1)            # (M, CP)
    max_val = jnp.max(dists, axis=-1, keepdims=True)                 # (M, 1) == <xn, m_bucket>
    bucket = jnp.min(jnp.where(dists == max_val, col, CP),
                     axis=-1, keepdims=True)                         # (M, 1)
    mb_sq = jnp.sum(jnp.where(col == bucket, msq_ref[0], 0.0),
                    axis=-1, keepdims=True)                          # (M, 1) == ||m_bucket||^2

    # Closed form: ||xn - m_b||^2 = ||xn||^2 - 2 <xn, m_b> + ||m_b||^2
    per_row = xn_sq - 2.0 * max_val + mb_sq                          # (M, 1)

    if seq_len % TL != 0:
        # Masked tail tile: rows past L hold undefined data -> zero their SSE.
        row_l = jax.lax.broadcasted_iota(jnp.int32, (B, TL, 1), 1).reshape(M, 1)
        per_row = jnp.where(lt * TL + row_l < seq_len, per_row, 0.0)

    sse_ref[...] = jnp.sum(per_row).reshape(1, 1, 1, 1)


def _round_up(v, m):
    return ((v + m - 1) // m) * m


def _vmem_capacity_bytes():
    # Generation-aware budget (v5e/v6e: 128 MiB, v7x: 64 MiB). Conservative
    # fallback if the query is unavailable.
    try:
        return int(pltpu.get_tpu_info().vmem_capacity_bytes)
    except Exception:
        return 64 << 20


def _choose_tile_l(B, L, D, C, CP, itemsize, tile_budget):
    """Largest L-tile fitting the budget: multiple of 8 (masked tail OK) or full L."""
    def fits(t):
        m = B * t
        fixed = 2 * D * CP * itemsize + 2 * CP * 4        # means + m_sq double-buffers
        blocks = 2 * m * (D + C) * itemsize               # x in + dists out, double-buffered
        interm = m * (2 * D + 3 * CP) * 4                 # f32 temporaries (x, xn, dists plane)
        return fixed + blocks + interm <= tile_budget

    if L < 8:
        return L
    if (B == 1 or L % 8 == 0) and L <= 1024 and fits(L):
        return L
    best = 8
    for t in range(8, min(L, 1024) + 1, 8):
        if fits(t):
            best = t
    return best


def kmeans_forward(x, means, commitment=COMMITMENT):
    """Equivalent of Kmeans.forward(x, update_means=False) -> (dists, loss)."""
    B, H, L, D = x.shape
    Hm, C, Dm = means.shape
    assert H == Hm and D == Dm
    assert B == 1 or L >= 8, (
        "kernel folds batch into the matmul M dim; needs L >= 8 when B > 1")

    means = means.astype(x.dtype)                  # torch: means = self.means.type(dtype)

    # Pre-transpose to (H, D, CP): plain contraction in-kernel and a lane-dense
    # means tile. Pad the cluster axis by replicating the last real cluster so
    # no validity masking is needed in the kernel.
    CP = _round_up(C, 128)
    means_t = jnp.transpose(means, (0, 2, 1))      # (H, D, C)
    if CP != C:
        means_t = jnp.pad(means_t, ((0, 0), (0, 0), (0, CP - C)), mode="edge")
    # Per-head ||m_c||^2 computed once in the wrapper (constant across L tiles).
    m_sq = jnp.sum(means_t.astype(jnp.float32) ** 2, axis=1, keepdims=True)  # (H, 1, CP)

    itemsize = jnp.dtype(x.dtype).itemsize
    cap = _vmem_capacity_bytes()
    if cap >= (96 << 20):          # 128 MiB parts (v5e / v6e): use the headroom
        tile_budget, vmem_limit = 56 << 20, 100 << 20
    else:                          # 64 MiB parts (v7x): stay conservative
        tile_budget, vmem_limit = 20 << 20, 44 << 20
    vmem_limit = min(vmem_limit, int(cap * 0.75))
    tile_budget = min(tile_budget, int(cap * 0.4))

    TL = _choose_tile_l(B, L, D, C, CP, itemsize, tile_budget)
    n_lt = pl.cdiv(L, TL)

    kernel = functools.partial(_kmeans_fwd_kernel, num_clusters=C, seq_len=L)

    # TODO(synk): for tiny C on v6e/v7x, packing two heads' means along the
    # 256-wide MXU lane axis could raise MXU fill further; not done here.
    dists, sse = pl.pallas_call(
        kernel,
        out_shape=(
            jax.ShapeDtypeStruct((B, H, L, C), x.dtype),
            jax.ShapeDtypeStruct((H, n_lt, 1, 1), jnp.float32),
        ),
        grid_spec=pltpu.PrefetchScalarGridSpec(
            num_scalar_prefetch=0,
            grid=(H, n_lt),        # head-major: means / m_sq blocks constant across L
            in_specs=[
                pl.BlockSpec((B, 1, TL, D), lambda h, lt: (0, h, lt, 0)),
                pl.BlockSpec((1, D, CP), lambda h, lt: (h, 0, 0)),
                pl.BlockSpec((1, 1, CP), lambda h, lt: (h, 0, 0)),
            ],
            out_specs=[
                pl.BlockSpec((B, 1, TL, C), lambda h, lt: (0, h, lt, 0)),
                pl.BlockSpec((1, 1, 1, 1), lambda h, lt: (h, lt, 0, 0)),
            ],
        ),
        compiler_params=pltpu.CompilerParams(
            # Per-(h, lt) SSE partials -> no resident accumulator, so both grid
            # axes are megacore-parallel (matters for 2-TC v7x).
            dimension_semantics=("parallel", "parallel"),
            vmem_limit_bytes=int(vmem_limit),
        ),
    )(x, means_t, m_sq)

    # F.mse_loss: mean over all B*H*L*D elements of (xn - routed_means)^2
    loss = (jnp.sum(sse) / (B * H * L * D)) * commitment
    return dists, loss


def _reference_forward(x, means, commitment=COMMITMENT):
    xn = x / jnp.maximum(
        jnp.sqrt(jnp.sum(x * x, axis=-1, keepdims=True)), NORM_EPS)
    dists = jnp.einsum('bhld,hcd->bhlc', xn, means)
    buckets = jnp.argmax(dists, axis=-1)                     # (B, H, L)
    H = means.shape[0]
    routed = means[jnp.arange(H)[None, :, None], buckets]    # (B, H, L, D)
    loss = jnp.mean((xn - routed) ** 2) * commitment
    return dists, loss


if __name__ == "__main__":
    B, H, L, D, C = 2, 4, 8, 32, 4

    key = jax.random.PRNGKey(0)
    kx, km = jax.random.split(key)
    x = jax.random.normal(kx, (B, H, L, D), dtype=jnp.float32)
    # deterministic stand-in for register_buffer('means', torch.randn(H, C, D))
    means = jax.random.normal(km, (H, C, D), dtype=jnp.float32)

    dists, loss = kmeans_forward(x, means)
    jax.block_until_ready((dists, loss))

    dists_ref, loss_ref = _reference_forward(x, means)
    assert dists.shape == dists_ref.shape
    assert jnp.allclose(dists, dists_ref, atol=1e-5, rtol=1e-5)
    assert jnp.allclose(loss, loss_ref, atol=1e-7, rtol=1e-4)

    print("KERNEL_OK")
</pallas_src>

<mosaic_0001>
module attributes {stable_mosaic.version = 11 : i64} {
  func.func @_kmeans_fwd_kernel(%arg0: i32, %arg1: i32, %arg2: memref<2x1x8x32xf32, #tpu.memory_space<vmem>>, %arg3: memref<1x32x128xf32, #tpu.memory_space<vmem>>, %arg4: memref<1x1x128xf32, #tpu.memory_space<vmem>>, %arg5: memref<2x1x8x4xf32, #tpu.memory_space<vmem>>, %arg6: memref<1x1x1x1xf32, #tpu.memory_space<vmem>>) attributes {dimension_semantics = [#tpu.dimension_semantics<parallel>, #tpu.dimension_semantics<parallel>], iteration_bounds = array<i64: 4, 1>, scalar_prefetch = 0 : i64, scratch_operands = 0 : i64, tpu.core_type = #tpu.core_type<tc>, window_params = [{transform_indices = @transform_0, window_bounds = array<i64: 2, 1, 8, 32>}, {transform_indices = @transform_1, window_bounds = array<i64: 1, 32, 128>}, {transform_indices = @transform_2, window_bounds = array<i64: 1, 1, 128>}, {transform_indices = @transform_3, window_bounds = array<i64: 2, 1, 8, 4>}, {transform_indices = @transform_4, window_bounds = array<i64: 1, 1, 1, 1>}]} {
    %c0 = arith.constant 0 : index
    %c0_0 = arith.constant 0 : index
    %c0_1 = arith.constant 0 : index
    %c0_2 = arith.constant 0 : index
    %0 = vector.load %arg2[%c0, %c0_0, %c0_1, %c0_2] : memref<2x1x8x32xf32, #tpu.memory_space<vmem>>, vector<2x1x8x32xf32>
    %1 = vector.shape_cast %0 : vector<2x1x8x32xf32> to vector<16x32xf32>
    %2 = arith.mulf %1, %1 : vector<16x32xf32>
    %cst = arith.constant dense<0.000000e+00> : vector<16xf32>
    %3 = vector.multi_reduction <add>, %2, %cst [1] : vector<16x32xf32> to vector<16xf32>
    %4 = vector.shape_cast %3 : vector<16xf32> to vector<16x1xf32>
    %cst_3 = arith.constant 1.000000e-24 : f32
    %5 = vector.broadcast %cst_3 : f32 to vector<16x1xf32>
    %6 = arith.maximumf %4, %5 : vector<16x1xf32>
    %7 = math.rsqrt %6 : vector<16x1xf32>
    %8 = vector.broadcast %7 : vector<16x1xf32> to vector<16x32xf32>
    %9 = arith.mulf %1, %8 : vector<16x32xf32>
    %10 = arith.mulf %7, %7 : vector<16x1xf32>
    %11 = arith.mulf %4, %10 : vector<16x1xf32>
    %c0_4 = arith.constant 0 : index
    %c0_5 = arith.constant 0 : index
    %c0_6 = arith.constant 0 : index
    %12 = vector.load %arg3[%c0_4, %c0_5, %c0_6] : memref<1x32x128xf32, #tpu.memory_space<vmem>>, vector<1x32x128xf32>
    %13 = vector.shape_cast %12 : vector<1x32x128xf32> to vector<32x128xf32>
    %cst_7 = arith.constant dense<0.000000e+00> : vector<16x128xf32>
    %14 = tpu.matmul %9, %13, %cst_7 {dimension_numbers = #tpu.dot_dimension_numbers<[1], [0], [0], [1], [0, 0, 1, 1], [], []>} : vector<16x32xf32>, vector<32x128xf32>, vector<16x128xf32> -> vector<16x128xf32>
    %15 = vector.extract_strided_slice %14 {offsets = [0, 0], sizes = [16, 4], strides = [1, 1]} : vector<16x128xf32> to vector<16x4xf32>
    %16 = vector.shape_cast %15 : vector<16x4xf32> to vector<2x1x8x4xf32>
    %c0_8 = arith.constant 0 : index
    %c0_9 = arith.constant 0 : index
    %c0_10 = arith.constant 0 : index
    %c0_11 = arith.constant 0 : index
    %17 = vector.load %arg5[%c0_8, %c0_9, %c0_10, %c0_11] : memref<2x1x8x4xf32, #tpu.memory_space<vmem>>, vector<2x1x8x4xf32>
    tpu.vector_store %arg5[%c0_8, %c0_9, %c0_10, %c0_11], %16 {strides = array<i32>} : memref<2x1x8x4xf32, #tpu.memory_space<vmem>>, vector<2x1x8x4xf32>,
    %18 = tpu.iota {dimensions = array<i32: 1>} : vector<16x128xi32>
    %cst_12 = arith.constant dense<0xFF800000> : vector<16xf32>
    %19 = vector.multi_reduction <maximumf>, %14, %cst_12 [1] : vector<16x128xf32> to vector<16xf32>
    %20 = vector.shape_cast %19 : vector<16xf32> to vector<16x1xf32>
    %21 = vector.broadcast %20 : vector<16x1xf32> to vector<16x128xf32>
    %22 = arith.cmpf oeq, %14, %21 : vector<16x128xf32>
    %c128_i32 = arith.constant 128 : i32
    %23 = vector.broadcast %c128_i32 : i32 to vector<16x128xi32>
    %24 = arith.select %22, %18, %23 : vector<16x128xi1>, vector<16x128xi32>
    %cst_13 = arith.constant dense<2147483647> : vector<16xi32>
    %25 = vector.multi_reduction <minsi>, %24, %cst_13 [1] : vector<16x128xi32> to vector<16xi32>
    %26 = vector.shape_cast %25 : vector<16xi32> to vector<16x1xi32>
    %27 = vector.broadcast %26 : vector<16x1xi32> to vector<16x128xi32>
    %28 = arith.cmpi eq, %18, %27 : vector<16x128xi32>
    %c0_14 = arith.constant 0 : index
    %c0_15 = arith.constant 0 : index
    %c0_16 = arith.constant 0 : index
    %29 = vector.load %arg4[%c0_14, %c0_15, %c0_16] : memref<1x1x128xf32, #tpu.memory_space<vmem>>, vector<1x1x128xf32>
    %30 = vector.shape_cast %29 : vector<1x1x128xf32> to vector<1x128xf32>
    %cst_17 = arith.constant 0.000000e+00 : f32
    %31 = vector.shape_cast %30 : vector<1x128xf32> to vector<1x128xf32>
    %32 = vector.broadcast %31 : vector<1x128xf32> to vector<16x128xf32>
    %33 = vector.broadcast %cst_17 : f32 to vector<16x128xf32>
    %34 = arith.select %28, %32, %33 : vector<16x128xi1>, vector<16x128xf32>
    %cst_18 = arith.constant dense<0.000000e+00> : vector<16xf32>
    %35 = vector.multi_reduction <add>, %34, %cst_18 [1] : vector<16x128xf32> to vector<16xf32>
    %36 = vector.shape_cast %35 : vector<16xf32> to vector<16x1xf32>
    %cst_19 = arith.constant 2.000000e+00 : f32
    %37 = vector.broadcast %cst_19 : f32 to vector<16x1xf32>
    %38 = arith.mulf %37, %20 : vector<16x1xf32>
    %39 = arith.subf %11, %38 : vector<16x1xf32>
    %40 = arith.addf %39, %36 : vector<16x1xf32>
    %41 = vector.shape_cast %40 : vector<16x1xf32> to vector<1x16x1xf32>
    %cst_20 = arith.constant dense<0.000000e+00> : vector<1xf32>
    %42 = vector.multi_reduction <add>, %41, %cst_20 [1, 2] : vector<1x16x1xf32> to vector<1xf32>
    %43 = vector.shape_cast %42 : vector<1xf32> to vector<1x1x1xf32>
    %44 = vector.extract %43[0, 0, 0] : f32 from vector<1x1x1xf32>
    %45 = vector.broadcast %44 : f32 to vector<1x1x1x1xf32>
    %c0_21 = arith.constant 0 : index
    %c0_22 = arith.constant 0 : index
    %c0_23 = arith.constant 0 : index
    %c0_24 = arith.constant 0 : index
    %46 = vector.load %arg6[%c0_21, %c0_22, %c0_23, %c0_24] : memref<1x1x1x1xf32, #tpu.memory_space<vmem>>, vector<1x1x1x1xf32>
    tpu.vector_store %arg6[%c0_21, %c0_22, %c0_23, %c0_24], %45 {strides = array<i32>} : memref<1x1x1x1xf32, #tpu.memory_space<vmem>>, vector<1x1x1x1xf32>,
    return
  }
  func.func @transform_0(%arg0: i32, %arg1: i32) -> (i32, i32, i32, i32) {
    %c0_i32 = arith.constant 0 : i32
    %c0_i32_0 = arith.constant 0 : i32
    %c0_i32_1 = arith.constant 0 : i32
    return %c0_i32, %arg0, %arg1, %c0_i32_0 : i32, i32, i32, i32
  }
  func.func @transform_1(%arg0: i32, %arg1: i32) -> (i32, i32, i32) {
    %c0_i32 = arith.constant 0 : i32
    %c0_i32_0 = arith.constant 0 : i32
    %c0_i32_1 = arith.constant 0 : i32
    return %arg0, %c0_i32, %c0_i32_0 : i32, i32, i32
  }
  func.func @transform_2(%arg0: i32, %arg1: i32) -> (i32, i32, i32) {
    %c0_i32 = arith.constant 0 : i32
    %c0_i32_0 = arith.constant 0 : i32
    %c0_i32_1 = arith.constant 0 : i32
    return %arg0, %c0_i32, %c0_i32_0 : i32, i32, i32
  }
  func.func @transform_3(%arg0: i32, %arg1: i32) -> (i32, i32, i32, i32) {
    %c0_i32 = arith.constant 0 : i32
    %c0_i32_0 = arith.constant 0 : i32
    %c0_i32_1 = arith.constant 0 : i32
    return %c0_i32, %arg0, %arg1, %c0_i32_0 : i32, i32, i32, i32
  }
  func.func @transform_4(%arg0: i32, %arg1: i32) -> (i32, i32, i32, i32) {
    %c0_i32 = arith.constant 0 : i32
    %c0_i32_0 = arith.constant 0 : i32
    %c0_i32_1 = arith.constant 0 : i32
    return %arg0, %arg1, %c0_i32, %c0_i32_0 : i32, i32, i32, i32
  }
}

</mosaic_0001>

<llo_original>
// kernel: tpu_custom_call.1
$region0: #{tpu_custom_call.1}
  #allocation0 [shape = 'u32[]', space=smem, size = 0x4, offset = 0x4, fixed_abs, tag = 'smem constant byte address 0x4 - core index']
  #allocation1 [shape = 'u32[144,128]{1,0:T(1,128)}', space=vmem, size = 0x12000, scoped, tag = 'internal scratch']
  %s0 = inlined_call_operand.hbm [shape: f32[2,4,8,32], index: 0, kind: input, shape index: {}]
  %s1 = inlined_call_operand.hbm [shape: f32[4,32,128], index: 1, kind: input, shape index: {}]
  %s2 = inlined_call_operand.vmem [shape: f32[4,1,128], index: 2, kind: input, shape index: {}]
  %s3 = inlined_call_operand.vmem [shape: f32[2,4,8,4], index: 3, kind: output, shape index: {0}]
  %s4 = inlined_call_operand.vmem [shape: f32[4,1,1,1], index: 4, kind: output, shape index: {1}]
  %5 = xla_tuple %s3, %s4
  %s6 = sld [smem:[#allocation0]]
  $region95: #{tpu_custom_call.1} parent=0
    _
  %s8 = ssub.s32 1, %s6
  %s9 = scalar_select 0, %s8, %s6
  $region1: #{tpu_custom_call.1} parent=0
    #allocation2 [shape = 'u8[16384]{0}', space=vmem, size = 0x4000, scoped, tag = 'input window, operand 0']
    #allocation3 [shape = 's32[2]{0}', space=sflag, size = 0x8, scoped, tag = 'scoped memory for tpu_custom_call.1']
    #allocation4 [shape = 'u8[32768]{0}', space=vmem, size = 0x8000, scoped, tag = 'input window, operand 1']
    #allocation5 [shape = 's32[2]{0}', space=sflag, size = 0x8, scoped, tag = 'scoped memory for tpu_custom_call.1']
    #allocation6 [shape = 'u8[16384]{0}', space=vmem, size = 0x4000, scoped, tag = 'output window, operand 0']
    %10 = vsyncpa [#allocation3], 0
    %s11 = scalar_lea.sflag [#allocation3], 1
    %12 = vsyncpa %s11, 0
    %13 = vsyncpa [#allocation5], 0
    %s14 = scalar_lea.sflag [#allocation5], 1
    %15 = vsyncpa %s14, 0
    loop: start=0, step=1, limit=6
    $region2: #{tpu_custom_call.1} parent=1 // loop_pre_header
      _
    $region3: #{tpu_custom_call.1} parent=1 // loop_header
      %s17 = sphi 0, %s21
      %p18 = scmp.ge.s32.totalorder %s17, 6
      %s24 = sphi 0, %s36
      %s25 = sphi 0, %s32
      %s26 = sphi 0, %s24
      %s27 = sphi 0, %s25
      %s28 = sphi 0, %s26
      %s29 = sphi 0, %s27
      %s41 = sphi 0, %s43
      %s44 = sphi 0, %s41
      %s45 = sphi 0, %s44
      %s61 = sphi 0, %s45
      %s67 = sphi 0, %s69
      %s70 = sphi 0, %s67
      %s71 = sphi 0, %s70
      %s87 = sphi 0, %s71
      %s93 = sphi 0, %s95
      %s96 = sphi 0, %s93
      %s97 = sphi 0, %s96
      %s113 = sphi 0, %s97
      %s121 = sphi 0, %s123
      %s124 = sphi 0, %s121
      %s125 = sphi 0, %s124
      %s141 = sphi 0, %s125
      %s149 = sphi 0, %s151
      %s152 = sphi 0, %s149
      %s153 = sphi 0, %s152
      %s169 = sphi 0, %s153
    $region4: #{tpu_custom_call.1} parent=1 // loop_header_branch
      %20 = sbr.rel (%p18) target = $region8
    $region5: #{tpu_custom_call.1} parent=1 // loop_body
      %s22 = ssub.s32 %s17, 1
      %s23 = ssub.s32 %s17, 2
      %s30 = sadd.s32 1, %s25
      %p31 = scmp.ge.s32.totalorder %s30, 1
      %s32 = scalar_select %p31, 0, %s30
      %s33 = sadd.s32 1, %s24
      %s34 = scalar_select %p31, %s33, %s24
      %p35 = scmp.ge.s32.totalorder %s34, 4
      %s36 = scalar_select %p35, 0, %s34
      %s37 = ssub.s32 %s24, %s36
      %s38 = ssub.s32 %s25, %s32
      %s39 = sor.u32 %s37, %s38
      %p40 = scmp.eq.s32.totalorder %s39, 0
      %s42 = sadd.s32 %s41, 1
      %s43 = scalar_select %p40, %s41, %s42
      %p46 = pneg %p40
      %p47 = scmp.eq.s32.totalorder %s17, 3
      %p48 = por %p46, %p47
      %p49 = scmp.ne.s32.totalorder %s41, %s44
      %p50 = scmp.eq.s32.totalorder %s17, 0
      %p51 = por %p49, %p50
      %p52 = scmp.ne.s32.totalorder %s41, %s44
      %p53 = scmp.eq.s32.totalorder %s22, 3
      %p54 = por %p52, %p53
      %p55 = scmp.ne.s32.totalorder %s44, %s45
      %p56 = scmp.eq.s32.totalorder %s22, 0
      %p57 = por %p55, %p56
      %p58 = scmp.ne.s32.totalorder %s44, %s45
      %p59 = scmp.eq.s32.totalorder %s23, 3
      %p60 = por %p58, %p59
      %p62 = scmp.ne.s32.totalorder %s45, %s61
      %p63 = scmp.eq.s32.totalorder %s23, 0
      %p64 = por %p62, %p63
      %s65 = ssub.s32 %s24, %s36
      %p66 = scmp.eq.s32.totalorder %s65, 0
      %s68 = sadd.s32 %s67, 1
      %s69 = scalar_select %p66, %s67, %s68
      %p72 = pneg %p66
      %p73 = scmp.eq.s32.totalorder %s17, 3
      %p74 = por %p72, %p73
      %p75 = scmp.ne.s32.totalorder %s67, %s70
      %p76 = scmp.eq.s32.totalorder %s17, 0
      %p77 = por %p75, %p76
      %p78 = scmp.ne.s32.totalorder %s67, %s70
      %p79 = scmp.eq.s32.totalorder %s22, 3
      %p80 = por %p78, %p79
      %p81 = scmp.ne.s32.totalorder %s70, %s71
      %p82 = scmp.eq.s32.totalorder %s22, 0
      %p83 = por %p81, %p82
      %p84 = scmp.ne.s32.totalorder %s70, %s71
      %p85 = scmp.eq.s32.totalorder %s23, 3
      %p86 = por %p84, %p85
      %p88 = scmp.ne.s32.totalorder %s71, %s87
      %p89 = scmp.eq.s32.totalorder %s23, 0
      %p90 = por %p88, %p89
      %s91 = ssub.s32 %s24, %s36
      %p92 = scmp.eq.s32.totalorder %s91, 0
      %s94 = sadd.s32 %s93, 1
      %s95 = scalar_select %p92, %s93, %s94
      %p98 = pneg %p92
      %p99 = scmp.eq.s32.totalorder %s17, 3
      %p100 = por %p98, %p99
      %p101 = scmp.ne.s32.totalorder %s93, %s96
      %p102 = scmp.eq.s32.totalorder %s17, 0
      %p103 = por %p101, %p102
      %p104 = scmp.ne.s32.totalorder %s93, %s96
      %p105 = scmp.eq.s32.totalorder %s22, 3
      %p106 = por %p104, %p105
      %p107 = scmp.ne.s32.totalorder %s96, %s97
      %p108 = scmp.eq.s32.totalorder %s22, 0
      %p109 = por %p107, %p108
      %p110 = scmp.ne.s32.totalorder %s96, %s97
      %p111 = scmp.eq.s32.totalorder %s23, 3
      %p112 = por %p110, %p111
      %p114 = scmp.ne.s32.totalorder %s97, %s113
      %p115 = scmp.eq.s32.totalorder %s23, 0
      %p116 = por %p114, %p115
      %s117 = ssub.s32 %s24, %s36
      %s118 = ssub.s32 %s25, %s32
      %s119 = sor.u32 %s117, %s118
      %p120 = scmp.eq.s32.totalorder %s119, 0
      %s122 = sadd.s32 %s121, 1
      %s123 = scalar_select %p120, %s121, %s122
      %p126 = pneg %p120
      %p127 = scmp.eq.s32.totalorder %s17, 3
      %p128 = por %p126, %p127
      %p129 = scmp.ne.s32.totalorder %s121, %s124
      %p130 = scmp.eq.s32.totalorder %s17, 0
      %p131 = por %p129, %p130
      %p132 = scmp.ne.s32.totalorder %s121, %s124
      %p133 = scmp.eq.s32.totalorder %s22, 3
      %p134 = por %p132, %p133
      %p135 = scmp.ne.s32.totalorder %s124, %s125
      %p136 = scmp.eq.s32.totalorder %s22, 0
      %p137 = por %p135, %p136
      %p138 = scmp.ne.s32.totalorder %s124, %s125
      %p139 = scmp.eq.s32.totalorder %s23, 3
      %p140 = por %p138, %p139
      %p142 = scmp.ne.s32.totalorder %s125, %s141
      %p143 = scmp.eq.s32.totalorder %s23, 0
      %p144 = por %p142, %p143
      %s145 = ssub.s32 %s24, %s36
      %s146 = ssub.s32 %s25, %s32
      %s147 = sor.u32 %s145, %s146
      %p148 = scmp.eq.s32.totalorder %s147, 0
      %s150 = sadd.s32 %s149, 1
      %s151 = scalar_select %p148, %s149, %s150
      %p154 = pneg %p148
      %p155 = scmp.eq.s32.totalorder %s17, 3
      %p156 = por %p154, %p155
      %p157 = scmp.ne.s32.totalorder %s149, %s152
      %p158 = scmp.eq.s32.totalorder %s17, 0
      %p159 = por %p157, %p158
      %p160 = scmp.ne.s32.totalorder %s149, %s152
      %p161 = scmp.eq.s32.totalorder %s22, 3
      %p162 = por %p160, %p161
      %p163 = scmp.ne.s32.totalorder %s152, %s153
      %p164 = scmp.eq.s32.totalorder %s22, 0
      %p165 = por %p163, %p164
      %p166 = scmp.ne.s32.totalorder %s152, %s153
      %p167 = scmp.eq.s32.totalorder %s23, 3
      %p168 = por %p166, %p167
      %p170 = scmp.ne.s32.totalorder %s153, %s169
      %p171 = scmp.eq.s32.totalorder %s23, 0
      %p172 = por %p170, %p171
      %p173 = scmp.le.s32.totalorder 1, %s17
      %p174 = scmp.lt.s32.totalorder %s17, 5
      %p175 = pnand %p173, %p174
      %p176 = pneg %p175
      // Predicated region
      $region9: #{tpu_custom_call.1} parent=5 // pred_check
        _
      $region10: #{tpu_custom_call.1} parent=5 // pred_check_branch
        %178 = sbr.rel (%p175) target = $region12
      $region11: #{tpu_custom_call.1} parent=5 // pred_region
        %s179 = ssub.s32 %s17, 1
      $region12: #{tpu_custom_call.1} parent=5 // pred_fallthru
        _
      %p180 = scmp.lt.s32.totalorder %s17, 4
      // Predicated region
      $region13: #{tpu_custom_call.1} parent=5 // pred_check
        %p181 = pneg %p180
      $region14: #{tpu_custom_call.1} parent=5 // pred_check_branch
        %183 = sbr.rel (%p181) target = $region16
      $region15: #{tpu_custom_call.1} parent=5 // pred_region
        // Predicated region
        $region17: #{tpu_custom_call.1} parent=15 // pred_check
          %p184 = pneg %p51
        $region18: #{tpu_custom_call.1} parent=15 // pred_check_branch
          %186 = sbr.rel (%p184) target = $region20
        $region19: #{tpu_custom_call.1} parent=15 // pred_region
          %s187 = sand.u32 %s41, 1
          %s188 = scalar_lea.sflag [#allocation3], %s187
          %s189 = sand.u32 %s41, 1
          %s190 = smul.addr %s189, 16
          %s191 = scalar_lea.vmem [#allocation2], %s190
          %s193 = ssub.s32 256, 256
          %194 = vsyncadd %s188, %s193
          %s195 = sadd.s32 %s25, %s24
          %s196 = smul.addr %s195, 128
          %s197 = scalar_lea.hbm %s0, %s196
          %s198 = sshll.u32 %s191, 4
          %s199 = int_to_ptr.vmem [resolvable:$true] %s198
          %204 = dma.hbm_to_vmem [thread:$0]  %s197, 256, %s199, %s188, 512, 128, 8
        $region20: #{tpu_custom_call.1} parent=15 // pred_fallthru
          _
        // Predicated region
        $region21: #{tpu_custom_call.1} parent=15 // pred_check
          %p205 = pneg %p77
        $region22: #{tpu_custom_call.1} parent=15 // pred_check_branch
          %207 = sbr.rel (%p205) target = $region24
        $region23: #{tpu_custom_call.1} parent=15 // pred_region
          %s208 = sand.u32 %s67, 1
          %s209 = scalar_lea.sflag [#allocation5], %s208
          %s210 = sand.u32 %s67, 1
          %s211 = smul.addr %s210, 32
          %s212 = scalar_lea.vmem [#allocation4], %s211
          %s214 = ssub.s32 512, 512
          %215 = vsyncadd %s209, %s214
          %s216 = smul.addr %s24, 4
          %s217 = smul.addr %s216, 128
          %s218 = scalar_lea.hbm %s1, %s217
          %s219 = sshll.u32 %s212, 4
          %s220 = int_to_ptr.vmem [resolvable:$true] %s219
          %225 = dma.hbm_to_vmem [thread:$0]  %s218, 512, %s220, %s209, 128, 128, 8
        $region24: #{tpu_custom_call.1} parent=15 // pred_fallthru
          _
        // Predicated region
        $region25: #{tpu_custom_call.1} parent=15 // pred_check
          %p226 = pneg %p103
        $region26: #{tpu_custom_call.1} parent=15 // pred_check_branch
          %228 = sbr.rel (%p226) target = $region28
        $region27: #{tpu_custom_call.1} parent=15 // pred_region
          %p229 = scmp.lt.s32.totalorder %s24, 3
          %s230 = scalar_select %p229, %s24, 3
          %s231 = scalar_lea.vmem %s2, %s230
        $region28: #{tpu_custom_call.1} parent=15 // pred_fallthru
          _
      $region16: #{tpu_custom_call.1} parent=5 // pred_fallthru
        _
      %p232 = scmp.le.s32.totalorder 1, %s17
      %p233 = scmp.lt.s32.totalorder %s17, 5
      %p234 = pnand %p232, %p233
      %p235 = pneg %p234
      // Predicated region
      $region29: #{tpu_custom_call.1} parent=5 // pred_check
        _
      $region30: #{tpu_custom_call.1} parent=5 // pred_check_branch
        %237 = sbr.rel (%p234) target = $region32
      $region31: #{tpu_custom_call.1} parent=5 // pred_region
        %s238 = ssub.s32 %s17, 1
        %s239 = sand.u32 %s44, 1
        %s240 = scalar_lea.sflag [#allocation3], %s239
        %s241 = sand.u32 %s44, 1
        %s242 = smul.addr %s241, 16
        %s243 = scalar_lea.vmem [#allocation2], %s242
        // Predicated region
        $region33: #{tpu_custom_call.1} parent=31 // pred_check
          %p244 = pneg %p57
        $region34: #{tpu_custom_call.1} parent=31 // pred_check_branch
          %246 = sbr.rel (%p244) target = $region36
        $region35: #{tpu_custom_call.1} parent=31 // pred_region
          %247 = dma.done %s240, 256
        $region36: #{tpu_custom_call.1} parent=31 // pred_fallthru
          _
        %s248 = sand.u32 %s70, 1
        %s249 = scalar_lea.sflag [#allocation5], %s248
        %s250 = sand.u32 %s70, 1
        %s251 = smul.addr %s250, 32
        %s252 = scalar_lea.vmem [#allocation4], %s251
        // Predicated region
        $region37: #{tpu_custom_call.1} parent=31 // pred_check
          %p253 = pneg %p83
        $region38: #{tpu_custom_call.1} parent=31 // pred_check_branch
          %255 = sbr.rel (%p253) target = $region40
        $region39: #{tpu_custom_call.1} parent=31 // pred_region
          %256 = dma.done %s249, 512
        $region40: #{tpu_custom_call.1} parent=31 // pred_fallthru
          _
        %s257 = sand.u32 %s44, 1
        %s258 = scalar_lea.sflag [#allocation3], %s257
        %s259 = sand.u32 %s44, 1
        %s260 = smul.addr %s259, 16
        %s261 = scalar_lea.vmem [#allocation2], %s260
        %p262 = pneg %p57
        %p263 = pneg %p54
        %s264 = sand.u32 %s70, 1
        %s265 = scalar_lea.sflag [#allocation5], %s264
        %s266 = sand.u32 %s70, 1
        %s267 = smul.addr %s266, 32
        %s268 = scalar_lea.vmem [#allocation4], %s267
        %p269 = pneg %p83
        %p270 = pneg %p80
        %p271 = scmp.lt.s32.totalorder %s26, 3
        %s272 = scalar_select %p271, %s26, 3
        %s273 = scalar_lea.vmem %s2, %s272
        %p274 = pneg %p109
        %p275 = pneg %p106
        %p276 = pneg %p137
        %p277 = pneg %p134
        %s278 = sand.u32 %s124, 1
        %s279 = sand.u32 %s124, 1
        %s280 = smul.addr %s279, 16
        %s281 = scalar_lea.vmem [#allocation6], %s280
        %p282 = pneg %p165
        %p283 = pneg %p162
        %p284 = scmp.lt.s32.totalorder %s26, 3
        %s285 = scalar_select %p284, %s26, 3
        %p286 = scmp.lt.s32.totalorder %s27, 0
        %s287 = scalar_select %p286, %s27, 0
        %s288 = sadd.s32 %s287, %s285
        %s289 = scalar_lea.vmem %s4, %s288
        %p290 = scmp.lt.s32.totalorder %s26, 3
        %s291 = scalar_select %p290, %s26, 3
        %s292 = scalar_lea.vmem %s2, %s291
        %p293 = scmp.lt.s32.totalorder %s26, 3
        %s294 = scalar_select %p293, %s26, 3
        %p295 = scmp.lt.s32.totalorder %s27, 0
        %s296 = scalar_select %p295, %s27, 0
        %s297 = sadd.s32 %s296, %s294
        %s298 = scalar_lea.vmem %s4, %s297
        %v299 = vld [vmem:[%s243] sm:$0xff]
        %v300 = vld [vmem:[%s243 + $0x8] sm:$0xff]
        %v301 = vmul.f32 %v299, %v299
        %v302 = vmul.f32 %v300, %v300
        %vm303 = vcmask 261120
        %v304 = vsel %vm303, %v301, 0.0
        %305 = vadd.xlane.f32.xlu0 %v304
        %v306 = vpop.xlane.xlu0 %305
        %v307 = vsel %vm303, %v302, 0.0
        %308 = vadd.xlane.f32.xlu0 %v307
        %v309 = vpop.xlane.xlu0 %308
        %v310 = vmax.f32 %v306, 1e-24
        %v311 = vmax.f32 %v309, 1e-24
        %v312 = vrsqrt.pop %v310
        %v313 = vrsqrt.pop %v311
        %v314 = vmul.f32 %v299, %v312
        %v315 = vmul.f32 %v300, %v313
        %v316 = vmul.f32 %v312, %v312
        %v317 = vmul.f32 %v313, %v313
        %v318 = vmul.f32 %v306, %v316
        %v319 = vmul.f32 %v309, %v317
        %v320 = vld [vmem:[%s252] sm:$0xff]
        %v321 = vld [vmem:[%s252 + $0x8] sm:$0xff]
        %v322 = vld [vmem:[%s252 + $0x10] sm:$0xff]
        %v323 = vld [vmem:[%s252 + $0x18] sm:$0xff]
        %v325 = vsel %vm303, %v314, 0
        %v328 = vsel %vm303, %v315, 0
        %330 = vmatprep.subr.mxu0 0.0
        %331 = vmatpush1.msra.mxu0 %v320
        %332 = vmatprep.subr.mxu0 0.0
        %333 = vmatpush1.msra.mxu0 %v321
        %334 = vmatprep.subr.mxu0 0.0
        %335 = vmatpush1.msra.mxu0 %v322
        %336 = vmatprep.subr.mxu0 0.0
        %337 = vmatpush1.msra.mxu0 %v323
        %338 = vmatprep.subr.mxu0 0.0
        %339 = vmatpush1.msra.mxu0 0.0
        %340 = vmatprep.subr.mxu0 0.0
        %341 = vmatpush1.msra.mxu0 0.0
        %342 = vmatprep.subr.mxu0 0.0
        %343 = vmatpush1.msra.mxu0 0.0
        %344 = vmatprep.subr.mxu0 0.0
        %345 = vmatpush1.msra.mxu0 0.0
        %346 = vmatprep.subr.mxu0 0.0
        %347 = vmatpush1.msra.mxu0 0.0
        %348 = vmatprep.subr.mxu0 0.0
        %349 = vmatpush1.msra.mxu0 0.0
        %350 = vmatprep.subr.mxu0 0.0
        %351 = vmatpush1.msra.mxu0 0.0
        %352 = vmatprep.subr.mxu0 0.0
        %353 = vmatpush1.msra.mxu0 0.0
        %354 = vmatprep.subr.mxu0 0.0
        %355 = vmatpush1.msra.mxu0 0.0
        %356 = vmatprep.subr.mxu0 0.0
        %357 = vmatpush1.msra.mxu0 0.0
        %358 = vmatprep.subr.mxu0 0.0
        %359 = vmatpush1.msra.mxu0 0.0
        %360 = vmatprep.subr.mxu0 0.0
        %361 = vmatpush1.msra.mxu0 0.0
        %362 = vmatprep.subr.mxu0 0.0
        %363 = vmatpush1.msra.mxu0 0.0
        %364 = vmatprep.subr.mxu0 0.0
        %365 = vmatpush1.msra.mxu0 0.0
        %366 = vmatprep.subr.mxu0 0.0
        %367 = vmatpush1.msra.mxu0 0.0
        %368 = vmatprep.subr.mxu0 0.0
        %369 = vmatpush1.msra.mxu0 0.0
        %370 = vmatprep.subr.mxu0 0.0
        %371 = vmatpush1.msra.mxu0 0.0
        %372 = vmatprep.subr.mxu0 0.0
        %373 = vmatpush1.msra.mxu0 0.0
        %374 = vmatprep.subr.mxu0 0.0
        %375 = vmatpush1.msra.mxu0 0.0
        %376 = vmatprep.subr.mxu0 0.0
        %377 = vmatpush1.msra.mxu0 0.0
        %378 = vmatprep.subr.mxu0 0.0
        %379 = vmatpush1.msra.mxu0 0.0
        %380 = vmatprep.subr.mxu0 0.0
        %381 = vmatpush1.msra.mxu0 0.0
        %382 = vmatprep.subr.mxu0 0.0
        %383 = vmatpush1.msra.mxu0 0.0
        %384 = vmatprep.subr.mxu0 0.0
        %385 = vmatpush1.msra.mxu0 0.0
        %386 = vmatprep.subr.mxu0 0.0
        %387 = vmatpush1.msra.mxu0 0.0
        %388 = vmatprep.subr.mxu0 0.0
        %389 = vmatpush1.msra.mxu0 0.0
        %390 = vmatprep.subr.mxu0 0.0
        %391 = vmatpush1.msra.mxu0 0.0
        %392 = vmatprep.subr.mxu0 0.0
        %393 = vmatpush1.msra.mxu0 0.0
        %394 = vmatprep.mubr.f32.mxu0 0.0
        %395 = vmatmul.mubr.f32.gmra.mrb[0].mxu0 %v325
        %v396 = vpop.f32.mrb[0].mxu0
        %v397 = vadd.f32 0.0, %v396
        %v398 = vpop.f32.mrb[0].mxu0
        %399 = vmatprep.mubr.f32.mxu0 0.0
        %400 = vmatmul.mubr.f32.gmra.mrb[0].mxu0 %v328
        %v401 = vpop.f32.mrb[0].mxu0
        %v402 = vadd.f32 0.0, %v401
        %v403 = vpop.f32.mrb[0].mxu0
        %404 = vdwg.mxu0
        %vm405 = vcmask 31744
        %406 = vst.msk [vmem:[%s281] sm:$0xff] %vm405, %v397
        %407 = vst.msk [vmem:[%s281 + $0x8] sm:$0xff] %vm405, %v402
        %v408 = vlaneseq
        %v409 = vand.u32 %v408, 127
        %410 = vmax.xlane.f32.xlu0 %v397
        %v411 = vpop.xlane.xlu0 %410
        %412 = vmax.xlane.f32.xlu0 %v402
        %v413 = vpop.xlane.xlu0 %412
        %vm414 = vcmp.eq.f32.partialorder %v397, %v411
        %vm415 = vcmp.eq.f32.partialorder %v402, %v413
        %v416 = vsel %vm414, %v409, 128
        %v417 = vsel %vm415, %v409, 128
        %v418 = vand.u32 %v416, 65535
        %v419 = vshra.s32 %v416, 16
        %v420 = vcvt.s32.f32 %v418
        %v421 = vcvt.s32.f32 %v419
        %422 = vmin.xlane.f32.xlu0 %v421
        %v423 = vpop.xlane.xlu0 %422
        %vm424 = vcmp.eq.f32.partialorder %v421, %v423
        %v425 = vsel %vm424, %v420, inf
        %426 = vmin.xlane.f32.xlu0 %v425
        %v427 = vpop.xlane.xlu0 %426
        %v428 = vcvt.f32.s32 %v427
        %v429 = vcvt.f32.s32 %v423
        %v430 = vshll.u32 %v429, 16
        %v431 = vadd.s32 %v430, %v428
        %v432 = vand.u32 %v417, 65535
        %v433 = vshra.s32 %v417, 16
        %v434 = vcvt.s32.f32 %v432
        %v435 = vcvt.s32.f32 %v433
        %436 = vmin.xlane.f32.xlu0 %v435
        %v437 = vpop.xlane.xlu0 %436
        %vm438 = vcmp.eq.f32.partialorder %v435, %v437
        %v439 = vsel %vm438, %v434, inf
        %440 = vmin.xlane.f32.xlu0 %v439
        %v441 = vpop.xlane.xlu0 %440
        %v442 = vcvt.f32.s32 %v441
        %v443 = vcvt.f32.s32 %v437
        %v444 = vshll.u32 %v443, 16
        %v445 = vadd.s32 %v444, %v442
        %vm446 = vcmp.eq.s32.totalorder %v409, %v431
        %vm447 = vcmp.eq.s32.totalorder %v409, %v445
        %v448 = vld [vmem:[%s292] sm:$0x1]
        %v450 = vlaneseq
        %v451 = vshrl.u32 %v450, 7
        %v452 = vsub.s32 0, %v451
        %v453 = vrot.slane %v448, %v452
        %v455 = vsel %vm446, %v453, 0.0
        %v456 = vsel %vm447, %v453, 0.0
        %457 = vadd.xlane.f32.xlu0 %v455
        %v458 = vpop.xlane.xlu0 %457
        %459 = vadd.xlane.f32.xlu0 %v456
        %v460 = vpop.xlane.xlu0 %459
        %v461 = vmul.f32 %v411, 2.0
        %v462 = vmul.f32 %v413, 2.0
        %v463 = vsub.f32 %v318, %v461
        %v464 = vsub.f32 %v319, %v462
        %v465 = vadd.f32 %v463, %v458
        %v466 = vadd.f32 %v464, %v460
        %vm467 = vcmask 7168
        %v468 = vsel %vm467, %v465, 0.0
        %v469 = vsel %vm467, %v466, 0.0
        %v470 = vadd.f32 %v468, %v469
        %471 = vadd.xlane.f32.xlu0 %v470
        %v472 = vpop.xlane.xlu0 %471
        %v473 = vrot.slane %v472, 4
        %v474 = vadd.f32 %v472, %v473
        %v475 = vrot.slane %v474, 2
        %v476 = vadd.f32 %v474, %v475
        %v477 = vrot.slane %v476, 1
        %v478 = vadd.f32 %v476, %v477
        %s479 = vtos %v478
        %v480 = vstv %s479
        %vm481 = vcmask 0
        %482 = vst.msk [vmem:[%s298] sm:$0x1] %vm481, %v480
        %s483 = sand.u32 %s124, 1
        %s484 = sand.u32 %s124, 1
        %s485 = smul.addr %s484, 16
        %s486 = scalar_lea.vmem [#allocation6], %s485
        %p487 = scmp.lt.s32.totalorder %s26, 3
        %s488 = scalar_select %p487, %s26, 3
        %p489 = scmp.lt.s32.totalorder %s27, 0
        %s490 = scalar_select %p489, %s27, 0
        %s491 = sadd.s32 %s490, %s488
        %s492 = scalar_lea.vmem %s4, %s491
        // Predicated region
        $region41: #{tpu_custom_call.1} parent=31 // pred_check
          %p493 = pneg %p134
        $region42: #{tpu_custom_call.1} parent=31 // pred_check_branch
          %495 = sbr.rel (%p493) target = $region44
        $region43: #{tpu_custom_call.1} parent=31 // pred_region
          %s496 = sadd.s32 %s27, %s26
          %s497 = smul.addr %s496, 8
          %s498 = scalar_lea.vmem %s3, %s497
          // Predicated region
          $region45: #{tpu_custom_call.1} parent=43 // pred_check
            _
          $region46: #{tpu_custom_call.1} parent=43 // pred_check_branch
            %500 = sbr.rel (0) target = $region48
          $region47: #{tpu_custom_call.1} parent=43 // pred_region
            // Predicated region
            $region49: #{tpu_custom_call.1} parent=47 // pred_check
              _
            $region50: #{tpu_custom_call.1} parent=47 // pred_check_branch
              %502 = sbr.rel (0) target = $region52
            $region51: #{tpu_custom_call.1} parent=47 // pred_region
              // Predicated region
              $region64: #{tpu_custom_call.1} parent=51 // pred_check
                _
              $region65: #{tpu_custom_call.1} parent=51 // pred_check_branch
                %519 = sbr.rel (0) target = $region67
              $region66: #{tpu_custom_call.1} parent=51 // pred_region
                loop: start=0, step=1, limit=1
                $region68: #{tpu_custom_call.1} parent=66 // loop_pre_header
                  _
                $region69: #{tpu_custom_call.1} parent=66 // loop_header
                  %s521 = sphi 0, %s525
                  %p522 = scmp.ge.s32.totalorder %s521, 1
                  %s526 = sphi %s486, %s486
                  %s527 = sphi %s498, %s498
                $region70: #{tpu_custom_call.1} parent=66 // loop_header_branch
                  %524 = sbr.rel (%p522) target = $region74
                $region71: #{tpu_custom_call.1} parent=66 // loop_body
                  %v528 = vld [vmem:[%s526] sm:$0xff]
                  %529 = vst [vmem:[%s527] sm:$0xff] %v528
                  %v530 = vld [vmem:[%s526 + $0x8] sm:$0xff]
                  %531 = vst [vmem:[%s527 + $0x20] sm:$0xff] %v530
                $region72: #{tpu_custom_call.1} parent=66 // loop_footer
                  %s525 = sadd.s32 1, %s521
                $region73: #{tpu_custom_call.1} parent=66 // loop_footer_branch
                  %520 = sbr.rel target = $region69
                $region74: #{tpu_custom_call.1} parent=66 // loop_exit
                  _
              $region67: #{tpu_custom_call.1} parent=51 // pred_fallthru
                _
              // Predicated region
              $region75: #{tpu_custom_call.1} parent=51 // pred_check
                _
              $region76: #{tpu_custom_call.1} parent=51 // pred_check_branch
                %533 = sbr.rel target = $region78
              $region77: #{tpu_custom_call.1} parent=51 // pred_region
                _
              $region78: #{tpu_custom_call.1} parent=51 // pred_fallthru
                _
            $region52: #{tpu_custom_call.1} parent=47 // pred_fallthru
              _
            // Predicated region
            $region53: #{tpu_custom_call.1} parent=47 // pred_check
              _
            $region54: #{tpu_custom_call.1} parent=47 // pred_check_branch
              %504 = sbr.rel target = $region56
            $region55: #{tpu_custom_call.1} parent=47 // pred_region
              loop: start=0, step=1, limit=1
              $region57: #{tpu_custom_call.1} parent=55 // loop_pre_header
                _
              $region58: #{tpu_custom_call.1} parent=55 // loop_header
                %s507 = sphi 0, %s511
                %p508 = scmp.ge.s32.totalorder %s507, 1
                %s512 = sphi %s486, %s486
                %s513 = sphi %s498, %s498
              $region59: #{tpu_custom_call.1} parent=55 // loop_header_branch
                %510 = sbr.rel (%p508) target = $region63
              $region60: #{tpu_custom_call.1} parent=55 // loop_body
                %v514 = vld [vmem:[%s512] sm:$0xff]
                %515 = vst [vmem:[%s513] sm:$0xff] %v514
                %v516 = vld [vmem:[%s512 + $0x8] sm:$0xff]
                %517 = vst [vmem:[%s513 + $0x20] sm:$0xff] %v516
              $region61: #{tpu_custom_call.1} parent=55 // loop_footer
                %s511 = sadd.s32 1, %s507
              $region62: #{tpu_custom_call.1} parent=55 // loop_footer_branch
                %506 = sbr.rel target = $region58
              $region63: #{tpu_custom_call.1} parent=55 // loop_exit
                _
            $region56: #{tpu_custom_call.1} parent=47 // pred_fallthru
              _
          $region48: #{tpu_custom_call.1} parent=43 // pred_fallthru
            _
          %534 = vnop
        $region44: #{tpu_custom_call.1} parent=31 // pred_fallthru
          _
        // Predicated region
        $region79: #{tpu_custom_call.1} parent=31 // pred_check
          %p535 = pneg %p162
        $region80: #{tpu_custom_call.1} parent=31 // pred_check_branch
          %537 = sbr.rel (%p535) target = $region82
        $region81: #{tpu_custom_call.1} parent=31 // pred_region
          _
        $region82: #{tpu_custom_call.1} parent=31 // pred_fallthru
          _
      $region32: #{tpu_custom_call.1} parent=5 // pred_fallthru
        _
      %p538 = scmp.le.s32.totalorder 2, %s17
      // Predicated region
      $region83: #{tpu_custom_call.1} parent=5 // pred_check
        %p539 = pneg %p538
      $region84: #{tpu_custom_call.1} parent=5 // pred_check_branch
        %541 = sbr.rel (%p539) target = $region86
      $region85: #{tpu_custom_call.1} parent=5 // pred_region
        %s542 = ssub.s32 %s17, 2
        // Predicated region
        $region87: #{tpu_custom_call.1} parent=85 // pred_check
          %p543 = pneg %p140
        $region88: #{tpu_custom_call.1} parent=85 // pred_check_branch
          %545 = sbr.rel (%p543) target = $region90
        $region89: #{tpu_custom_call.1} parent=85 // pred_region
          %s546 = sand.u32 %s125, 1
          %s547 = sand.u32 %s125, 1
          %s548 = smul.addr %s547, 16
          %s549 = scalar_lea.vmem [#allocation6], %s548
        $region90: #{tpu_custom_call.1} parent=85 // pred_fallthru
          _
        // Predicated region
        $region91: #{tpu_custom_call.1} parent=85 // pred_check
          %p550 = pneg %p168
        $region92: #{tpu_custom_call.1} parent=85 // pred_check_branch
          %552 = sbr.rel (%p550) target = $region94
        $region93: #{tpu_custom_call.1} parent=85 // pred_region
          %p553 = scmp.lt.s32.totalorder %s28, 3
          %s554 = scalar_select %p553, %s28, 3
          %p555 = scmp.lt.s32.totalorder %s29, 0
          %s556 = scalar_select %p555, %s29, 0
          %s557 = sadd.s32 %s556, %s554
          %s558 = scalar_lea.vmem %s4, %s557
        $region94: #{tpu_custom_call.1} parent=85 // pred_fallthru
          _
      $region86: #{tpu_custom_call.1} parent=5 // pred_fallthru
        _
    $region6: #{tpu_custom_call.1} parent=1 // loop_footer
      %s21 = sadd.s32 1, %s17
    $region7: #{tpu_custom_call.1} parent=1 // loop_footer_branch
      %16 = sbr.rel target = $region3
    $region8: #{tpu_custom_call.1} parent=1 // loop_exit
      _
    %559 = vsyncpa [#allocation3], 1
    %s560 = scalar_lea.sflag [#allocation3], 1
    %561 = vsyncpa %s560, 1
    %562 = vsyncpa [#allocation5], 1
    %s563 = scalar_lea.sflag [#allocation5], 1
    %564 = vsyncpa %s563, 1

</llo_original>
